<compile_context>
chip_gen: v7x
topology: tpu7x:2x2x1
jax: 0.10.0
libtpu: 0.0.40
codegen_flags: <defaults>
</compile_context>

<pallas_src>
import math

import jax
import jax.numpy as jnp
from jax.experimental import pallas as pl
from jax.experimental.pallas import tpu as pltpu


def _project_kernel(clip_ref, wv_ref, bv_ref, wo_ref, bo_ref, y_ref):
    # clip_ref : (1, C, 1)  clip embedding column for this batch element
    # wv_ref   : (C, C)     value projection weight, torch (out, in) layout
    # bv_ref   : (C, 1)     value projection bias (column)
    # wo_ref   : (C, C)     out projection weight, torch (out, in) layout
    # bo_ref   : (C, 1)     out projection bias (column)
    # y_ref    : (1, C, 1)  fused projection column y_b = Wo@(Wv@clip_b + bv) + bo
    v = jnp.dot(wv_ref[...], clip_ref[0],
                preferred_element_type=jnp.float32) + bv_ref[...]      # (C, 1)
    y = jnp.dot(wo_ref[...], v,
                preferred_element_type=jnp.float32) + bo_ref[...]      # (C, 1)
    y_ref[0] = y.astype(y_ref.dtype)


def _broadcast_kernel(y_ref, o_ref):
    # y_ref : (B, C, 1)  fused projection columns (whole array, VMEM-resident)
    # o_ref : (1, C, TL) lane-dense NCHW-flattened output tile
    b = pl.program_id(0)
    col = y_ref[b]                                                     # (C, 1)
    o_ref[0] = jnp.broadcast_to(col, o_ref.shape[1:]).astype(o_ref.dtype)


def _choose_tile_l(L, C, itemsize):
    """Lane-dense L tile: whole L when small (single step, handles L % 128 != 0),
    otherwise a multiple of 128 sized so the double-buffered output tile stays
    within a conservative VMEM budget (safe on v7x's 64 MiB)."""
    tile_pair_budget = 12 * 1024 * 1024          # 2 * C * TL * itemsize
    if L <= 128 or 2 * C * L * itemsize <= tile_pair_budget:
        return L
    tl = (tile_pair_budget // (2 * C * itemsize)) // 128 * 128
    return int(max(128, min(tl, 4096)))


def cross_attention_fusion(resnet_feats, clip_feats, params, num_heads):
    """resnet_feats: (B, C, H, W) NCHW, clip_feats: (B, C). Returns (B, C, H, W)."""
    B, C, H, W = resnet_feats.shape
    L = H * W
    assert C % num_heads == 0   # head split cancels out in the closed form
    out_dtype = resnet_feats.dtype

    # Only the value- and out-projection parameters survive the simplification.
    # (Assumes the fused in_proj layout, i.e. kdim == vdim == embed_dim.)
    W_in = params["in_proj_weight"]                  # (3C, C)  rows = [Wq; Wk; Wv]
    b_in = params["in_proj_bias"]                    # (3C,)
    wv = W_in[2 * C:3 * C]                           # (C, C) torch (out, in) layout
    bv = b_in[2 * C:3 * C].reshape(C, 1)             # (C, 1) column
    wo = params["out_proj_weight"]                   # (C, C) torch (out, in) layout
    bo = params["out_proj_bias"].reshape(C, 1)       # (C, 1) column

    clip_col = clip_feats.reshape(B, C, 1)           # channel-on-sublane columns

    # --- Kernel 1: fused projection, once per batch element (L-independent) ------
    y = pl.pallas_call(
        _project_kernel,
        out_shape=jax.ShapeDtypeStruct((B, C, 1), jnp.float32),
        grid_spec=pltpu.PrefetchScalarGridSpec(
            num_scalar_prefetch=0,
            grid=(B,),
            in_specs=[
                pl.BlockSpec((1, C, 1), lambda b: (b, 0, 0)),   # clip column
                pl.BlockSpec((C, C), lambda b: (0, 0)),         # Wv (fetched once)
                pl.BlockSpec((C, 1), lambda b: (0, 0)),         # bv
                pl.BlockSpec((C, C), lambda b: (0, 0)),         # Wo (fetched once)
                pl.BlockSpec((C, 1), lambda b: (0, 0)),         # bo
            ],
            out_specs=pl.BlockSpec((1, C, 1), lambda b: (b, 0, 0)),
        ),
        compiler_params=pltpu.CompilerParams(
            dimension_semantics=("parallel",)),
        cost_estimate=pl.CostEstimate(
            flops=4 * B * C * C, transcendentals=0,
            bytes_accessed=2 * C * C * 4 + 4 * B * C * 4),
    )(clip_col, wv, bv, wo, bo)

    # --- Kernel 2: HBM-write-bound broadcast store over the spatial positions ----
    TL = _choose_tile_l(L, C, jnp.dtype(out_dtype).itemsize)
    n_l = pl.cdiv(L, TL)

    out = pl.pallas_call(
        _broadcast_kernel,
        out_shape=jax.ShapeDtypeStruct((B, C, L), out_dtype),
        grid_spec=pltpu.PrefetchScalarGridSpec(
            num_scalar_prefetch=0,
            grid=(B, n_l),
            in_specs=[
                # Y untiled: one small DMA, resident across the whole grid.
                pl.BlockSpec((B, C, 1), lambda b, l: (0, 0, 0)),
            ],
            out_specs=pl.BlockSpec((1, C, TL), lambda b, l: (b, 0, l)),
        ),
        compiler_params=pltpu.CompilerParams(
            dimension_semantics=("parallel", "parallel"),
            vmem_limit_bytes=32 * 1024 * 1024),
        cost_estimate=pl.CostEstimate(
            flops=0, transcendentals=0,
            bytes_accessed=B * C * L * jnp.dtype(out_dtype).itemsize + B * C * 4),
    )(y)

    # (B, C, L) is already NCHW-flattened: reshape only, no transpose.
    return out.reshape(B, C, H, W)


def reference(resnet_feats, clip_feats, params, num_heads):
    """Pure-JAX reference mirroring torch.nn.MultiheadAttention semantics (full path)."""
    B, C, H, W = resnet_feats.shape
    L = H * W
    hd = C // num_heads
    q_in = resnet_feats.reshape(B, C, L).transpose(2, 0, 1)       # (L, B, C)
    kv_in = jnp.broadcast_to(clip_feats[None], (L, B, C))         # (L, B, C)
    W_in, b_in = params["in_proj_weight"], params["in_proj_bias"]
    wq, wk, wv = W_in[:C], W_in[C:2 * C], W_in[2 * C:]
    bq, bk, bv = b_in[:C], b_in[C:2 * C], b_in[2 * C:]
    q = q_in @ wq.T + bq
    k = kv_in @ wk.T + bk
    v = kv_in @ wv.T + bv
    qh = q.reshape(L, B, num_heads, hd)
    kh = k.reshape(L, B, num_heads, hd)
    vh = v.reshape(L, B, num_heads, hd)
    s = jnp.einsum("lbhd,sbhd->bhls", qh, kh) / math.sqrt(hd)
    p = jax.nn.softmax(s, axis=-1)
    o = jnp.einsum("bhls,sbhd->lbhd", p, vh).reshape(L, B, C)
    o = o @ params["out_proj_weight"].T + params["out_proj_bias"]
    return o.transpose(1, 2, 0).reshape(B, C, H, W)


if __name__ == "__main__":
    B, C, H, W = 2, 32, 8, 8
    num_heads = 4

    key = jax.random.PRNGKey(0)
    k1, k2, k3, k4, k5, k6 = jax.random.split(key, 6)
    resnet_feats = jax.random.normal(k1, (B, C, H, W), jnp.float32)
    clip_feats = jax.random.normal(k2, (B, C), jnp.float32)

    # Deterministic synthetic parameters (shapes match nn.MultiheadAttention(C, 4)).
    params = {
        "in_proj_weight": jax.random.normal(k3, (3 * C, C), jnp.float32) / math.sqrt(C),
        "in_proj_bias": 0.02 * jax.random.normal(k4, (3 * C,), jnp.float32),
        "out_proj_weight": jax.random.normal(k5, (C, C), jnp.float32) / math.sqrt(C),
        "out_proj_bias": 0.02 * jax.random.normal(k6, (C,), jnp.float32),
    }

    out = cross_attention_fusion(resnet_feats, clip_feats, params, num_heads)
    out = jax.block_until_ready(out)
    assert out.shape == (B, C, H, W)

    ref = reference(resnet_feats, clip_feats, params, num_heads)
    max_err = float(jnp.max(jnp.abs(out - ref)))
    assert max_err < 2e-4, f"max_err={max_err}"

    print("KERNEL_OK")
</pallas_src>

<mosaic_0001>
module attributes {stable_mosaic.version = 11 : i64} {
  func.func @_project_kernel(%arg0: i32, %arg1: memref<1x32x1xf32, #tpu.memory_space<vmem>>, %arg2: memref<32x32xf32, #tpu.memory_space<vmem>>, %arg3: memref<32x1xf32, #tpu.memory_space<vmem>>, %arg4: memref<32x32xf32, #tpu.memory_space<vmem>>, %arg5: memref<32x1xf32, #tpu.memory_space<vmem>>, %arg6: memref<1x32x1xf32, #tpu.memory_space<vmem>>) attributes {dimension_semantics = [#tpu.dimension_semantics<parallel>], iteration_bounds = array<i64: 2>, scalar_prefetch = 0 : i64, scratch_operands = 0 : i64, tpu.core_type = #tpu.core_type<tc>, window_params = [{transform_indices = @transform_0, window_bounds = array<i64: 1, 32, 1>}, {pipeline_mode = #tpu.pipeline_mode<synchronous>, transform_indices = @transform_1, window_bounds = array<i64: 32, 32>}, {pipeline_mode = #tpu.pipeline_mode<synchronous>, transform_indices = @transform_2, window_bounds = array<i64: 32, 1>}, {pipeline_mode = #tpu.pipeline_mode<synchronous>, transform_indices = @transform_3, window_bounds = array<i64: 32, 32>}, {pipeline_mode = #tpu.pipeline_mode<synchronous>, transform_indices = @transform_4, window_bounds = array<i64: 32, 1>}, {transform_indices = @transform_5, window_bounds = array<i64: 1, 32, 1>}]} {
    %c0 = arith.constant 0 : index
    %c0_0 = arith.constant 0 : index
    %0 = vector.load %arg2[%c0, %c0_0] : memref<32x32xf32, #tpu.memory_space<vmem>>, vector<32x32xf32>
    %c0_1 = arith.constant 0 : index
    %c0_2 = arith.constant 0 : index
    %c0_3 = arith.constant 0 : index
    %1 = vector.load %arg1[%c0_1, %c0_2, %c0_3] : memref<1x32x1xf32, #tpu.memory_space<vmem>>, vector<1x32x1xf32>
    %2 = vector.shape_cast %1 : vector<1x32x1xf32> to vector<32x1xf32>
    %cst = arith.constant dense<0.000000e+00> : vector<32x1xf32>
    %3 = tpu.matmul %0, %2, %cst {dimension_numbers = #tpu.dot_dimension_numbers<[1], [0], [0], [1], [0, 0, 1, 1], [], []>} : vector<32x32xf32>, vector<32x1xf32>, vector<32x1xf32> -> vector<32x1xf32>
    %c0_4 = arith.constant 0 : index
    %c0_5 = arith.constant 0 : index
    %4 = vector.load %arg3[%c0_4, %c0_5] : memref<32x1xf32, #tpu.memory_space<vmem>>, vector<32x1xf32>
    %5 = arith.addf %3, %4 : vector<32x1xf32>
    %c0_6 = arith.constant 0 : index
    %c0_7 = arith.constant 0 : index
    %6 = vector.load %arg4[%c0_6, %c0_7] : memref<32x32xf32, #tpu.memory_space<vmem>>, vector<32x32xf32>
    %cst_8 = arith.constant dense<0.000000e+00> : vector<32x1xf32>
    %7 = tpu.matmul %6, %5, %cst_8 {dimension_numbers = #tpu.dot_dimension_numbers<[1], [0], [0], [1], [0, 0, 1, 1], [], []>} : vector<32x32xf32>, vector<32x1xf32>, vector<32x1xf32> -> vector<32x1xf32>
    %c0_9 = arith.constant 0 : index
    %c0_10 = arith.constant 0 : index
    %8 = vector.load %arg5[%c0_9, %c0_10] : memref<32x1xf32, #tpu.memory_space<vmem>>, vector<32x1xf32>
    %9 = arith.addf %7, %8 : vector<32x1xf32>
    %c0_11 = arith.constant 0 : index
    %c0_12 = arith.constant 0 : index
    %c0_13 = arith.constant 0 : index
    %10 = vector.load %arg6[%c0_11, %c0_12, %c0_13] : memref<1x32x1xf32, #tpu.memory_space<vmem>>, vector<1x32x1xf32>
    %11 = vector.shape_cast %10 : vector<1x32x1xf32> to vector<32x1xf32>
    %12 = vector.shape_cast %9 : vector<32x1xf32> to vector<1x32x1xf32>
    tpu.vector_store %arg6[%c0_11, %c0_12, %c0_13], %12 {strides = array<i32>} : memref<1x32x1xf32, #tpu.memory_space<vmem>>, vector<1x32x1xf32>,
    return
  }
  func.func @transform_0(%arg0: i32) -> (i32, i32, i32) {
    %c0_i32 = arith.constant 0 : i32
    %c0_i32_0 = arith.constant 0 : i32
    %c0_i32_1 = arith.constant 0 : i32
    return %arg0, %c0_i32, %c0_i32_0 : i32, i32, i32
  }
  func.func @transform_1(%arg0: i32) -> (i32, i32) {
    %c0_i32 = arith.constant 0 : i32
    %c0_i32_0 = arith.constant 0 : i32
    %c0_i32_1 = arith.constant 0 : i32
    return %c0_i32, %c0_i32_0 : i32, i32
  }
  func.func @transform_2(%arg0: i32) -> (i32, i32) {
    %c0_i32 = arith.constant 0 : i32
    %c0_i32_0 = arith.constant 0 : i32
    %c0_i32_1 = arith.constant 0 : i32
    return %c0_i32, %c0_i32_0 : i32, i32
  }
  func.func @transform_3(%arg0: i32) -> (i32, i32) {
    %c0_i32 = arith.constant 0 : i32
    %c0_i32_0 = arith.constant 0 : i32
    %c0_i32_1 = arith.constant 0 : i32
    return %c0_i32, %c0_i32_0 : i32, i32
  }
  func.func @transform_4(%arg0: i32) -> (i32, i32) {
    %c0_i32 = arith.constant 0 : i32
    %c0_i32_0 = arith.constant 0 : i32
    %c0_i32_1 = arith.constant 0 : i32
    return %c0_i32, %c0_i32_0 : i32, i32
  }
  func.func @transform_5(%arg0: i32) -> (i32, i32, i32) {
    %c0_i32 = arith.constant 0 : i32
    %c0_i32_0 = arith.constant 0 : i32
    %c0_i32_1 = arith.constant 0 : i32
    return %arg0, %c0_i32, %c0_i32_0 : i32, i32, i32
  }
}

</mosaic_0001>

<llo_original>
// kernel: tpu_custom_call.1
$region0: #{tpu_custom_call.1}
  #allocation0 [shape = 'u32[]', space=smem, size = 0x4, offset = 0x4, fixed_abs, tag = 'smem constant byte address 0x4 - core index']
  #allocation1 [shape = 'u32[144,128]{1,0:T(1,128)}', space=vmem, size = 0x12000, scoped, tag = 'internal scratch']
  %s0 = inlined_call_operand.vmem [shape: f32[2,32,1], index: 0, kind: input, shape index: {}]
  %s1 = inlined_call_operand.vmem [shape: f32[32,32], index: 1, kind: input, shape index: {}]
  %s2 = inlined_call_operand.vmem [shape: f32[32,1], index: 2, kind: input, shape index: {}]
  %s3 = inlined_call_operand.vmem [shape: f32[32,32], index: 3, kind: input, shape index: {}]
  %s4 = inlined_call_operand.vmem [shape: f32[32,1], index: 4, kind: input, shape index: {}]
  %s5 = inlined_call_operand.vmem [shape: f32[2,32,1], index: 5, kind: output, shape index: {}]
  %s6 = sld [smem:[#allocation0]]
  $region53: #{tpu_custom_call.1} parent=0
    _
  %s8 = ssub.s32 1, %s6
  %s9 = scalar_select 0, %s8, %s6
  loop: start=0, step=1, limit=4
  $region2: #{tpu_custom_call.1} parent=0 // loop_pre_header
    _
  $region3: #{tpu_custom_call.1} parent=0 // loop_header
    %s11 = sphi 0, %s15
    %p12 = scmp.ge.s32.totalorder %s11, 4
    %s21 = sphi 0, %s23
    %s24 = sphi 0, %s21
    %s25 = sphi 0, %s24
    %s41 = sphi 0, %s25
    %s45 = sphi 0, %s45
    %s47 = sphi 0, %s45
    %s48 = sphi 0, %s47
    %s62 = sphi 0, %s48
    %s66 = sphi 0, %s66
    %s68 = sphi 0, %s66
    %s69 = sphi 0, %s68
    %s83 = sphi 0, %s69
    %s87 = sphi 0, %s87
    %s89 = sphi 0, %s87
    %s90 = sphi 0, %s89
    %s104 = sphi 0, %s90
    %s108 = sphi 0, %s108
    %s110 = sphi 0, %s108
    %s111 = sphi 0, %s110
    %s125 = sphi 0, %s111
    %s131 = sphi 0, %s133
    %s134 = sphi 0, %s131
    %s135 = sphi 0, %s134
    %s151 = sphi 0, %s135
  $region4: #{tpu_custom_call.1} parent=0 // loop_header_branch
    %14 = sbr.rel (%p12) target = $region8
  $region5: #{tpu_custom_call.1} parent=0 // loop_body
    %s16 = ssub.s32 %s11, 1
    %s17 = ssub.s32 %s11, 2
    %s18 = sadd.s32 %s11, 1
    %s19 = ssub.s32 %s11, %s18
    %p20 = scmp.eq.s32.totalorder %s19, 0
    %s22 = sadd.s32 %s21, 1
    %s23 = scalar_select %p20, %s21, %s22
    %p26 = pneg %p20
    %p27 = scmp.eq.s32.totalorder %s11, 1
    %p28 = por %p26, %p27
    %p29 = scmp.ne.s32.totalorder %s21, %s24
    %p30 = scmp.eq.s32.totalorder %s11, 0
    %p31 = por %p29, %p30
    %p32 = scmp.ne.s32.totalorder %s21, %s24
    %p33 = scmp.eq.s32.totalorder %s16, 1
    %p34 = por %p32, %p33
    %p35 = scmp.ne.s32.totalorder %s24, %s25
    %p36 = scmp.eq.s32.totalorder %s16, 0
    %p37 = por %p35, %p36
    %p38 = scmp.ne.s32.totalorder %s24, %s25
    %p39 = scmp.eq.s32.totalorder %s17, 1
    %p40 = por %p38, %p39
    %p42 = scmp.ne.s32.totalorder %s25, %s41
    %p43 = scmp.eq.s32.totalorder %s17, 0
    %p44 = por %p42, %p43
    %s46 = sadd.s32 %s45, 1
    %p49 = scmp.eq.s32.totalorder %s11, 1
    %p50 = scmp.ne.s32.totalorder %s45, %s47
    %p51 = scmp.eq.s32.totalorder %s11, 0
    %p52 = por %p50, %p51
    %p53 = scmp.ne.s32.totalorder %s45, %s47
    %p54 = scmp.eq.s32.totalorder %s16, 1
    %p55 = por %p53, %p54
    %p56 = scmp.ne.s32.totalorder %s47, %s48
    %p57 = scmp.eq.s32.totalorder %s16, 0
    %p58 = por %p56, %p57
    %p59 = scmp.ne.s32.totalorder %s47, %s48
    %p60 = scmp.eq.s32.totalorder %s17, 1
    %p61 = por %p59, %p60
    %p63 = scmp.ne.s32.totalorder %s48, %s62
    %p64 = scmp.eq.s32.totalorder %s17, 0
    %p65 = por %p63, %p64
    %s67 = sadd.s32 %s66, 1
    %p70 = scmp.eq.s32.totalorder %s11, 1
    %p71 = scmp.ne.s32.totalorder %s66, %s68
    %p72 = scmp.eq.s32.totalorder %s11, 0
    %p73 = por %p71, %p72
    %p74 = scmp.ne.s32.totalorder %s66, %s68
    %p75 = scmp.eq.s32.totalorder %s16, 1
    %p76 = por %p74, %p75
    %p77 = scmp.ne.s32.totalorder %s68, %s69
    %p78 = scmp.eq.s32.totalorder %s16, 0
    %p79 = por %p77, %p78
    %p80 = scmp.ne.s32.totalorder %s68, %s69
    %p81 = scmp.eq.s32.totalorder %s17, 1
    %p82 = por %p80, %p81
    %p84 = scmp.ne.s32.totalorder %s69, %s83
    %p85 = scmp.eq.s32.totalorder %s17, 0
    %p86 = por %p84, %p85
    %s88 = sadd.s32 %s87, 1
    %p91 = scmp.eq.s32.totalorder %s11, 1
    %p92 = scmp.ne.s32.totalorder %s87, %s89
    %p93 = scmp.eq.s32.totalorder %s11, 0
    %p94 = por %p92, %p93
    %p95 = scmp.ne.s32.totalorder %s87, %s89
    %p96 = scmp.eq.s32.totalorder %s16, 1
    %p97 = por %p95, %p96
    %p98 = scmp.ne.s32.totalorder %s89, %s90
    %p99 = scmp.eq.s32.totalorder %s16, 0
    %p100 = por %p98, %p99
    %p101 = scmp.ne.s32.totalorder %s89, %s90
    %p102 = scmp.eq.s32.totalorder %s17, 1
    %p103 = por %p101, %p102
    %p105 = scmp.ne.s32.totalorder %s90, %s104
    %p106 = scmp.eq.s32.totalorder %s17, 0
    %p107 = por %p105, %p106
    %s109 = sadd.s32 %s108, 1
    %p112 = scmp.eq.s32.totalorder %s11, 1
    %p113 = scmp.ne.s32.totalorder %s108, %s110
    %p114 = scmp.eq.s32.totalorder %s11, 0
    %p115 = por %p113, %p114
    %p116 = scmp.ne.s32.totalorder %s108, %s110
    %p117 = scmp.eq.s32.totalorder %s16, 1
    %p118 = por %p116, %p117
    %p119 = scmp.ne.s32.totalorder %s110, %s111
    %p120 = scmp.eq.s32.totalorder %s16, 0
    %p121 = por %p119, %p120
    %p122 = scmp.ne.s32.totalorder %s110, %s111
    %p123 = scmp.eq.s32.totalorder %s17, 1
    %p124 = por %p122, %p123
    %p126 = scmp.ne.s32.totalorder %s111, %s125
    %p127 = scmp.eq.s32.totalorder %s17, 0
    %p128 = por %p126, %p127
    %s129 = ssub.s32 %s11, %s18
    %p130 = scmp.eq.s32.totalorder %s129, 0
    %s132 = sadd.s32 %s131, 1
    %s133 = scalar_select %p130, %s131, %s132
    %p136 = pneg %p130
    %p137 = scmp.eq.s32.totalorder %s11, 1
    %p138 = por %p136, %p137
    %p139 = scmp.ne.s32.totalorder %s131, %s134
    %p140 = scmp.eq.s32.totalorder %s11, 0
    %p141 = por %p139, %p140
    %p142 = scmp.ne.s32.totalorder %s131, %s134
    %p143 = scmp.eq.s32.totalorder %s16, 1
    %p144 = por %p142, %p143
    %p145 = scmp.ne.s32.totalorder %s134, %s135
    %p146 = scmp.eq.s32.totalorder %s16, 0
    %p147 = por %p145, %p146
    %p148 = scmp.ne.s32.totalorder %s134, %s135
    %p149 = scmp.eq.s32.totalorder %s17, 1
    %p150 = por %p148, %p149
    %p152 = scmp.ne.s32.totalorder %s135, %s151
    %p153 = scmp.eq.s32.totalorder %s17, 0
    %p154 = por %p152, %p153
    %p155 = scmp.le.s32.totalorder 1, %s11
    %p156 = scmp.lt.s32.totalorder %s11, 3
    %p157 = pnand %p155, %p156
    %p158 = pneg %p157
    // Predicated region
    $region9: #{tpu_custom_call.1} parent=5 // pred_check
      _
    $region10: #{tpu_custom_call.1} parent=5 // pred_check_branch
      %160 = sbr.rel (%p157) target = $region12
    $region11: #{tpu_custom_call.1} parent=5 // pred_region
      %s161 = ssub.s32 %s11, 1
      // Predicated region
      $region13: #{tpu_custom_call.1} parent=11 // pred_check
        %p162 = pneg %p58
      $region14: #{tpu_custom_call.1} parent=11 // pred_check_branch
        %164 = sbr.rel (%p162) target = $region16
      $region15: #{tpu_custom_call.1} parent=11 // pred_region
        _
      $region16: #{tpu_custom_call.1} parent=11 // pred_fallthru
        _
      // Predicated region
      $region17: #{tpu_custom_call.1} parent=11 // pred_check
        %p165 = pneg %p79
      $region18: #{tpu_custom_call.1} parent=11 // pred_check_branch
        %167 = sbr.rel (%p165) target = $region20
      $region19: #{tpu_custom_call.1} parent=11 // pred_region
        _
      $region20: #{tpu_custom_call.1} parent=11 // pred_fallthru
        _
      // Predicated region
      $region21: #{tpu_custom_call.1} parent=11 // pred_check
        %p168 = pneg %p100
      $region22: #{tpu_custom_call.1} parent=11 // pred_check_branch
        %170 = sbr.rel (%p168) target = $region24
      $region23: #{tpu_custom_call.1} parent=11 // pred_region
        _
      $region24: #{tpu_custom_call.1} parent=11 // pred_fallthru
        _
      // Predicated region
      $region25: #{tpu_custom_call.1} parent=11 // pred_check
        %p171 = pneg %p121
      $region26: #{tpu_custom_call.1} parent=11 // pred_check_branch
        %173 = sbr.rel (%p171) target = $region28
      $region27: #{tpu_custom_call.1} parent=11 // pred_region
        _
      $region28: #{tpu_custom_call.1} parent=11 // pred_fallthru
        _
    $region12: #{tpu_custom_call.1} parent=5 // pred_fallthru
      _
    %p174 = scmp.lt.s32.totalorder %s11, 2
    // Predicated region
    $region29: #{tpu_custom_call.1} parent=5 // pred_check
      %p175 = pneg %p174
    $region30: #{tpu_custom_call.1} parent=5 // pred_check_branch
      %177 = sbr.rel (%p175) target = $region32
    $region31: #{tpu_custom_call.1} parent=5 // pred_region
      // Predicated region
      $region33: #{tpu_custom_call.1} parent=31 // pred_check
        %p178 = pneg %p31
      $region34: #{tpu_custom_call.1} parent=31 // pred_check_branch
        %180 = sbr.rel (%p178) target = $region36
      $region35: #{tpu_custom_call.1} parent=31 // pred_region
        %p181 = scmp.lt.s32.totalorder %s11, 1
        %s182 = scalar_select %p181, %s11, 1
        %s183 = smul.addr %s182, 4
        %s184 = smul.addr %s183, 8
        %s185 = scalar_lea.vmem %s0, %s184
      $region36: #{tpu_custom_call.1} parent=31 // pred_fallthru
        _
    $region32: #{tpu_custom_call.1} parent=5 // pred_fallthru
      _
    %p186 = scmp.le.s32.totalorder 1, %s11
    %p187 = scmp.lt.s32.totalorder %s11, 3
    %p188 = pnand %p186, %p187
    %p189 = pneg %p188
    // Predicated region
    $region37: #{tpu_custom_call.1} parent=5 // pred_check
      _
    $region38: #{tpu_custom_call.1} parent=5 // pred_check_branch
      %191 = sbr.rel (%p188) target = $region40
    $region39: #{tpu_custom_call.1} parent=5 // pred_region
      %s192 = ssub.s32 %s11, 1
      %p193 = scmp.lt.s32.totalorder %s16, 1
      %s194 = scalar_select %p193, %s16, 1
      %s195 = smul.addr %s194, 4
      %s196 = smul.addr %s195, 8
      %s197 = scalar_lea.vmem %s0, %s196
      %p198 = pneg %p37
      %p199 = pneg %p34
      %p200 = pneg %p58
      %p201 = pneg %p55
      %p202 = pneg %p79
      %p203 = pneg %p76
      %p204 = pneg %p100
      %p205 = pneg %p97
      %p206 = pneg %p121
      %p207 = pneg %p118
      %p208 = pneg %p147
      %p209 = pneg %p144
      %p210 = scmp.lt.s32.totalorder %s16, 1
      %s211 = scalar_select %p210, %s16, 1
      %s212 = smul.addr %s211, 4
      %s213 = smul.addr %s212, 8
      %s214 = scalar_lea.vmem %s5, %s213
      %p215 = scmp.lt.s32.totalorder %s16, 1
      %s216 = scalar_select %p215, %s16, 1
      %s217 = smul.addr %s216, 4
      %s218 = smul.addr %s217, 8
      %s219 = scalar_lea.vmem %s0, %s218
      %p220 = scmp.lt.s32.totalorder %s16, 1
      %s221 = scalar_select %p220, %s16, 1
      %s222 = smul.addr %s221, 4
      %s223 = smul.addr %s222, 8
      %s224 = scalar_lea.vmem %s5, %s223
      %v225 = vld [vmem:[%s1] sm:$0xff]
      %v226 = vld [vmem:[%s1 + $0x8] sm:$0xff]
      %v227 = vld [vmem:[%s1 + $0x10] sm:$0xff]
      %v228 = vld [vmem:[%s1 + $0x18] sm:$0xff]
      %v229 = vld [vmem:[%s219] sm:$0xff]
      %v230 = vld [vmem:[%s219 + $0x8] sm:$0xff]
      %v231 = vld [vmem:[%s219 + $0x10] sm:$0xff]
      %v232 = vld [vmem:[%s219 + $0x18] sm:$0xff]
      %v233 = vld [vmem:[%s2] sm:$0xff]
      %v234 = vld [vmem:[%s2 + $0x8] sm:$0xff]
      %v235 = vld [vmem:[%s2 + $0x10] sm:$0xff]
      %v236 = vld [vmem:[%s2 + $0x18] sm:$0xff]
      %vm237 = vcmask 261120
      %v239 = vsel %vm237, %v225, 0
      %v242 = vsel %vm237, %v226, 0
      %v245 = vsel %vm237, %v227, 0
      %v248 = vsel %vm237, %v228, 0
      %250 = vmatprep.subr.mxu0 0.0
      %251 = vmatpush1.msra.mxu0 %v229
      %252 = vmatprep.subr.mxu0 0.0
      %253 = vmatpush1.msra.mxu0 %v230
      %254 = vmatprep.subr.mxu0 0.0
      %255 = vmatpush1.msra.mxu0 %v231
      %256 = vmatprep.subr.mxu0 0.0
      %257 = vmatpush1.msra.mxu0 %v232
      %258 = vmatprep.subr.mxu0 0.0
      %259 = vmatpush1.msra.mxu0 0.0
      %260 = vmatprep.subr.mxu0 0.0
      %261 = vmatpush1.msra.mxu0 0.0
      %262 = vmatprep.subr.mxu0 0.0
      %263 = vmatpush1.msra.mxu0 0.0
      %264 = vmatprep.subr.mxu0 0.0
      %265 = vmatpush1.msra.mxu0 0.0
      %266 = vmatprep.subr.mxu0 0.0
      %267 = vmatpush1.msra.mxu0 0.0
      %268 = vmatprep.subr.mxu0 0.0
      %269 = vmatpush1.msra.mxu0 0.0
      %270 = vmatprep.subr.mxu0 0.0
      %271 = vmatpush1.msra.mxu0 0.0
      %272 = vmatprep.subr.mxu0 0.0
      %273 = vmatpush1.msra.mxu0 0.0
      %274 = vmatprep.subr.mxu0 0.0
      %275 = vmatpush1.msra.mxu0 0.0
      %276 = vmatprep.subr.mxu0 0.0
      %277 = vmatpush1.msra.mxu0 0.0
      %278 = vmatprep.subr.mxu0 0.0
      %279 = vmatpush1.msra.mxu0 0.0
      %280 = vmatprep.subr.mxu0 0.0
      %281 = vmatpush1.msra.mxu0 0.0
      %282 = vmatprep.subr.mxu0 0.0
      %283 = vmatpush1.msra.mxu0 0.0
      %284 = vmatprep.subr.mxu0 0.0
      %285 = vmatpush1.msra.mxu0 0.0
      %286 = vmatprep.subr.mxu0 0.0
      %287 = vmatpush1.msra.mxu0 0.0
      %288 = vmatprep.subr.mxu0 0.0
      %289 = vmatpush1.msra.mxu0 0.0
      %290 = vmatprep.subr.mxu0 0.0
      %291 = vmatpush1.msra.mxu0 0.0
      %292 = vmatprep.subr.mxu0 0.0
      %293 = vmatpush1.msra.mxu0 0.0
      %294 = vmatprep.subr.mxu0 0.0
      %295 = vmatpush1.msra.mxu0 0.0
      %296 = vmatprep.subr.mxu0 0.0
      %297 = vmatpush1.msra.mxu0 0.0
      %298 = vmatprep.subr.mxu0 0.0
      %299 = vmatpush1.msra.mxu0 0.0
      %300 = vmatprep.subr.mxu0 0.0
      %301 = vmatpush1.msra.mxu0 0.0
      %302 = vmatprep.subr.mxu0 0.0
      %303 = vmatpush1.msra.mxu0 0.0
      %304 = vmatprep.subr.mxu0 0.0
      %305 = vmatpush1.msra.mxu0 0.0
      %306 = vmatprep.subr.mxu0 0.0
      %307 = vmatpush1.msra.mxu0 0.0
      %308 = vmatprep.subr.mxu0 0.0
      %309 = vmatpush1.msra.mxu0 0.0
      %310 = vmatprep.subr.mxu0 0.0
      %311 = vmatpush1.msra.mxu0 0.0
      %312 = vmatprep.subr.mxu0 0.0
      %313 = vmatpush1.msra.mxu0 0.0
      %314 = vmatprep.mubr.f32.mxu0 0.0
      %315 = vmatmul.mubr.f32.gmra.mrb[0].mxu0 %v239
      %v316 = vpop.f32.mrb[0].mxu0
      %v317 = vadd.f32 %v233, %v316
      %v318 = vpop.f32.mrb[0].mxu0
      %319 = vmatprep.mubr.f32.mxu0 0.0
      %320 = vmatmul.mubr.f32.gmra.mrb[0].mxu0 %v242
      %v321 = vpop.f32.mrb[0].mxu0
      %v322 = vadd.f32 %v234, %v321
      %v323 = vpop.f32.mrb[0].mxu0
      %324 = vmatprep.mubr.f32.mxu0 0.0
      %325 = vmatmul.mubr.f32.gmra.mrb[0].mxu0 %v245
      %v326 = vpop.f32.mrb[0].mxu0
      %v327 = vadd.f32 %v235, %v326
      %v328 = vpop.f32.mrb[0].mxu0
      %329 = vmatprep.mubr.f32.mxu0 0.0
      %330 = vmatmul.mubr.f32.gmra.mrb[0].mxu0 %v248
      %v331 = vpop.f32.mrb[0].mxu0
      %v332 = vadd.f32 %v236, %v331
      %v333 = vpop.f32.mrb[0].mxu0
      %334 = vdwg.mxu0
      %v335 = vld [vmem:[%s3] sm:$0xff]
      %v336 = vld [vmem:[%s3 + $0x8] sm:$0xff]
      %v337 = vld [vmem:[%s3 + $0x10] sm:$0xff]
      %v338 = vld [vmem:[%s3 + $0x18] sm:$0xff]
      %v339 = vld [vmem:[%s4] sm:$0xff]
      %v340 = vld [vmem:[%s4 + $0x8] sm:$0xff]
      %v341 = vld [vmem:[%s4 + $0x10] sm:$0xff]
      %v342 = vld [vmem:[%s4 + $0x18] sm:$0xff]
      %v344 = vsel %vm237, %v335, 0
      %v347 = vsel %vm237, %v336, 0
      %v350 = vsel %vm237, %v337, 0
      %v353 = vsel %vm237, %v338, 0
      %355 = vmatprep.subr.mxu0 0.0
      %356 = vmatpush1.msra.mxu0 %v317
      %357 = vmatprep.subr.mxu0 0.0
      %358 = vmatpush1.msra.mxu0 %v322
      %359 = vmatprep.subr.mxu0 0.0
      %360 = vmatpush1.msra.mxu0 %v327
      %361 = vmatprep.subr.mxu0 0.0
      %362 = vmatpush1.msra.mxu0 %v332
      %363 = vmatprep.subr.mxu0 0.0
      %364 = vmatpush1.msra.mxu0 0.0
      %365 = vmatprep.subr.mxu0 0.0
      %366 = vmatpush1.msra.mxu0 0.0
      %367 = vmatprep.subr.mxu0 0.0
      %368 = vmatpush1.msra.mxu0 0.0
      %369 = vmatprep.subr.mxu0 0.0
      %370 = vmatpush1.msra.mxu0 0.0
      %371 = vmatprep.subr.mxu0 0.0
      %372 = vmatpush1.msra.mxu0 0.0
      %373 = vmatprep.subr.mxu0 0.0
      %374 = vmatpush1.msra.mxu0 0.0
      %375 = vmatprep.subr.mxu0 0.0
      %376 = vmatpush1.msra.mxu0 0.0
      %377 = vmatprep.subr.mxu0 0.0
      %378 = vmatpush1.msra.mxu0 0.0
      %379 = vmatprep.subr.mxu0 0.0
      %380 = vmatpush1.msra.mxu0 0.0
      %381 = vmatprep.subr.mxu0 0.0
      %382 = vmatpush1.msra.mxu0 0.0
      %383 = vmatprep.subr.mxu0 0.0
      %384 = vmatpush1.msra.mxu0 0.0
      %385 = vmatprep.subr.mxu0 0.0
      %386 = vmatpush1.msra.mxu0 0.0
      %387 = vmatprep.subr.mxu0 0.0
      %388 = vmatpush1.msra.mxu0 0.0
      %389 = vmatprep.subr.mxu0 0.0
      %390 = vmatpush1.msra.mxu0 0.0
      %391 = vmatprep.subr.mxu0 0.0
      %392 = vmatpush1.msra.mxu0 0.0
      %393 = vmatprep.subr.mxu0 0.0
      %394 = vmatpush1.msra.mxu0 0.0
      %395 = vmatprep.subr.mxu0 0.0
      %396 = vmatpush1.msra.mxu0 0.0
      %397 = vmatprep.subr.mxu0 0.0
      %398 = vmatpush1.msra.mxu0 0.0
      %399 = vmatprep.subr.mxu0 0.0
      %400 = vmatpush1.msra.mxu0 0.0
      %401 = vmatprep.subr.mxu0 0.0
      %402 = vmatpush1.msra.mxu0 0.0
      %403 = vmatprep.subr.mxu0 0.0
      %404 = vmatpush1.msra.mxu0 0.0
      %405 = vmatprep.subr.mxu0 0.0
      %406 = vmatpush1.msra.mxu0 0.0
      %407 = vmatprep.subr.mxu0 0.0
      %408 = vmatpush1.msra.mxu0 0.0
      %409 = vmatprep.subr.mxu0 0.0
      %410 = vmatpush1.msra.mxu0 0.0
      %411 = vmatprep.subr.mxu0 0.0
      %412 = vmatpush1.msra.mxu0 0.0
      %413 = vmatprep.subr.mxu0 0.0
      %414 = vmatpush1.msra.mxu0 0.0
      %415 = vmatprep.subr.mxu0 0.0
      %416 = vmatpush1.msra.mxu0 0.0
      %417 = vmatprep.subr.mxu0 0.0
      %418 = vmatpush1.msra.mxu0 0.0
      %419 = vmatprep.mubr.f32.mxu0 0.0
      %420 = vmatmul.mubr.f32.gmra.mrb[0].mxu0 %v344
      %v421 = vpop.f32.mrb[0].mxu0
      %v422 = vadd.f32 %v339, %v421
      %v423 = vpop.f32.mrb[0].mxu0
      %424 = vmatprep.mubr.f32.mxu0 0.0
      %425 = vmatmul.mubr.f32.gmra.mrb[0].mxu0 %v347
      %v426 = vpop.f32.mrb[0].mxu0
      %v427 = vadd.f32 %v340, %v426
      %v428 = vpop.f32.mrb[0].mxu0
      %429 = vmatprep.mubr.f32.mxu0 0.0
      %430 = vmatmul.mubr.f32.gmra.mrb[0].mxu0 %v350
      %v431 = vpop.f32.mrb[0].mxu0
      %v432 = vadd.f32 %v341, %v431
      %v433 = vpop.f32.mrb[0].mxu0
      %434 = vmatprep.mubr.f32.mxu0 0.0
      %435 = vmatmul.mubr.f32.gmra.mrb[0].mxu0 %v353
      %v436 = vpop.f32.mrb[0].mxu0
      %v437 = vadd.f32 %v342, %v436
      %v438 = vpop.f32.mrb[0].mxu0
      %439 = vdwg.mxu0
      %vm440 = vcmask 7168
      %441 = vst.msk [vmem:[%s224] sm:$0xff] %vm440, %v422
      %442 = vst.msk [vmem:[%s224 + $0x8] sm:$0xff] %vm440, %v427
      %443 = vst.msk [vmem:[%s224 + $0x10] sm:$0xff] %vm440, %v432
      %444 = vst.msk [vmem:[%s224 + $0x18] sm:$0xff] %vm440, %v437
      %p445 = scmp.lt.s32.totalorder %s16, 1
      %s446 = scalar_select %p445, %s16, 1
      %s447 = smul.addr %s446, 4
      %s448 = smul.addr %s447, 8
      %s449 = scalar_lea.vmem %s5, %s448
      // Predicated region
      $region41: #{tpu_custom_call.1} parent=39 // pred_check
        %p450 = pneg %p144
      $region42: #{tpu_custom_call.1} parent=39 // pred_check_branch
        %452 = sbr.rel (%p450) target = $region44
      $region43: #{tpu_custom_call.1} parent=39 // pred_region
        _
      $region44: #{tpu_custom_call.1} parent=39 // pred_fallthru
        _
    $region40: #{tpu_custom_call.1} parent=5 // pred_fallthru
      _
    %p453 = scmp.le.s32.totalorder 2, %s11
    // Predicated region
    $region45: #{tpu_custom_call.1} parent=5 // pred_check
      %p454 = pneg %p453
    $region46: #{tpu_custom_call.1} parent=5 // pred_check_branch
      %456 = sbr.rel (%p454) target = $region48
    $region47: #{tpu_custom_call.1} parent=5 // pred_region
      %s457 = ssub.s32 %s11, 2
      // Predicated region
      $region49: #{tpu_custom_call.1} parent=47 // pred_check
        %p458 = pneg %p150
      $region50: #{tpu_custom_call.1} parent=47 // pred_check_branch
        %460 = sbr.rel (%p458) target = $region52
      $region51: #{tpu_custom_call.1} parent=47 // pred_region
        %p461 = scmp.lt.s32.totalorder %s17, 1
        %s462 = scalar_select %p461, %s17, 1
        %s463 = smul.addr %s462, 4
        %s464 = smul.addr %s463, 8
        %s465 = scalar_lea.vmem %s5, %s464
      $region52: #{tpu_custom_call.1} parent=47 // pred_fallthru
        _
    $region48: #{tpu_custom_call.1} parent=5 // pred_fallthru
      _
  $region6: #{tpu_custom_call.1} parent=0 // loop_footer
    %s15 = sadd.s32 1, %s11
  $region7: #{tpu_custom_call.1} parent=0 // loop_footer_branch
    %10 = sbr.rel target = $region3
  $region8: #{tpu_custom_call.1} parent=0 // loop_exit
    _

</llo_original>
